<compile_context>
chip_gen: v7x
topology: tpu7x:2x2x1
jax: 0.10.0
libtpu: 0.0.40
codegen_flags: <defaults>
</compile_context>

<pallas_src>
import jax
import jax.numpy as jnp
from jax.experimental import pallas as pl
from jax.experimental.pallas import tpu as pltpu


def _net_kernel(x_ref, p_ref, out_ref):
    # Layout: batch on the lane (last) axis.
    #   x_ref : (1, B)  f32   input row (lane-dense)
    #   p_ref : (H, 4)  f32   packed params: [:,0]=w1, [:,1]=b1, [:,2]=w2, [:,3]=b2
    #   out_ref:(1, B)  f32
    x = x_ref[...]                                   # (1, B)
    w1 = p_ref[:, 0:1]                               # (H, 1)  static views, no cost
    b1 = p_ref[:, 1:2]                               # (H, 1)
    w2 = p_ref[:, 2:3]                               # (H, 1)
    b2 = p_ref[0:1, 3:4]                             # (1, 1)

    # Hidden layer: n_feature == 1 contraction == outer product -> pure VPU + ReLU.
    h = jnp.maximum(w1 * x + b1, 0.0)                # (H, B)

    # Output layer: n_output == 1 -> weighted reduction over H.
    wh = w2 * h                                      # (H, B)
    # Explicit pairwise tree: cross-vreg VPU adds, then one in-vreg sublane reduce.
    n = wh.shape[0]
    while n % 2 == 0 and n > 8:
        half = n // 2
        wh = wh[:half] + wh[half:]
        n = half
    y = jnp.sum(wh, axis=0, keepdims=True)           # (1, B)

    out_ref[...] = (y + b2).astype(out_ref.dtype)


def pack_params(w1, b1, w2, b2):
    """Pack (w1, b1, w2, b2) into a single (H, 4) f32 slab (one VMEM DMA)."""
    H = w1.shape[1]
    return jnp.concatenate(
        [
            w1.reshape(H, 1).astype(jnp.float32),
            b1.reshape(H, 1).astype(jnp.float32),
            w2.reshape(H, 1).astype(jnp.float32),
            jnp.broadcast_to(b2.reshape(1, 1).astype(jnp.float32), (H, 1)),
        ],
        axis=1,
    )                                                # (H, 4)


def net_forward(x, w1, b1, w2, b2):
    """PyTorch `Net` forward: relu(x @ W1 + b1) @ W2 + b2.

    x : (B, n_feature) f32        (n_feature must be 1, as in the spec)
    w1: (n_feature, n_hidden) f32 (stored transposed vs. torch)
    b1: (1, n_hidden) f32
    w2: (n_hidden, n_output) f32  (n_output must be 1, as in the spec)
    b2: (1, n_output) f32
    returns (B, n_output) f32
    """
    B, F = x.shape
    H = w1.shape[1]
    O = w2.shape[1]
    assert F == 1 and O == 1, "kernel specialized for n_feature == n_output == 1"

    # (B, 1) -> (1, B) is metadata-only (same row-major data order).
    x_row = x.reshape(1, B).astype(jnp.float32)
    params = pack_params(w1, b1, w2, b2)             # (H, 4)

    flops = 2 * B * (F * H + H * O)
    bytes_accessed = 4 * (2 * B + 4 * H)

    out_row = pl.pallas_call(
        _net_kernel,
        out_shape=jax.ShapeDtypeStruct((1, B), jnp.float32),
        in_specs=[
            pl.BlockSpec(memory_space=pltpu.MemorySpace.VMEM),  # x (1, B)
            pl.BlockSpec(memory_space=pltpu.MemorySpace.VMEM),  # params (H, 4)
        ],
        out_specs=pl.BlockSpec(memory_space=pltpu.MemorySpace.VMEM),
        cost_estimate=pl.CostEstimate(
            flops=flops, transcendentals=0, bytes_accessed=bytes_accessed),
    )(x_row, params)

    # Back to the PyTorch layout (B, n_output); metadata-only reshape.
    return out_row.reshape(B, O)


def init_params(key, n_feature, n_hidden, n_output):
    """Deterministic init mimicking torch.nn.Linear default U(-1/sqrt(fan_in), 1/sqrt(fan_in))."""
    k1, k2, k3, k4 = jax.random.split(key, 4)
    bound1 = 1.0 / jnp.sqrt(jnp.float32(n_feature))
    bound2 = 1.0 / jnp.sqrt(jnp.float32(n_hidden))
    # Stored already-transposed relative to PyTorch: (in, out).
    w1 = jax.random.uniform(k1, (n_feature, n_hidden), jnp.float32, -bound1, bound1)
    b1 = jax.random.uniform(k2, (1, n_hidden), jnp.float32, -bound1, bound1)
    w2 = jax.random.uniform(k3, (n_hidden, n_output), jnp.float32, -bound2, bound2)
    b2 = jax.random.uniform(k4, (1, n_output), jnp.float32, -bound2, bound2)
    return w1, b1, w2, b2


if __name__ == "__main__":
    n_feature, n_hidden, n_output = 1, 32, 1
    batch = 100

    key = jax.random.PRNGKey(0)
    w1, b1, w2, b2 = init_params(key, n_feature, n_hidden, n_output)

    # Input matching the reference script: linspace(-1, 1, 100) unsqueezed to (100, 1).
    x = jnp.linspace(-1.0, 1.0, batch, dtype=jnp.float32).reshape(batch, n_feature)

    net_fwd = jax.jit(net_forward)
    out = net_fwd(x, w1, b1, w2, b2)
    jax.block_until_ready(out)

    # Pure-JAX reference of the same math.
    ref = jnp.maximum(x @ w1 + b1, 0.0) @ w2 + b2
    assert out.shape == (batch, n_output)
    assert jnp.allclose(out, ref, atol=1e-5, rtol=1e-5)

    print("KERNEL_OK")
</pallas_src>

<mosaic_0001>
module attributes {stable_mosaic.version = 11 : i64} {
  func.func @_net_kernel(%arg0: memref<1x100xf32, #tpu.memory_space<vmem>>, %arg1: memref<32x4xf32, #tpu.memory_space<vmem>>, %arg2: memref<1x100xf32, #tpu.memory_space<vmem>>) attributes {dimension_semantics = [], scalar_prefetch = 0 : i64, scratch_operands = 0 : i64, tpu.core_type = #tpu.core_type<tc>} {
    %c0 = arith.constant 0 : index
    %c0_0 = arith.constant 0 : index
    %0 = vector.load %arg0[%c0, %c0_0] : memref<1x100xf32, #tpu.memory_space<vmem>>, vector<1x100xf32>
    %c0_1 = arith.constant 0 : index
    %c0_2 = arith.constant 0 : index
    %1 = vector.load %arg1[%c0_1, %c0_2] : memref<32x4xf32, #tpu.memory_space<vmem>>, vector<32x1xf32>
    %c0_3 = arith.constant 0 : index
    %c1 = arith.constant 1 : index
    %2 = vector.load %arg1[%c0_3, %c1] : memref<32x4xf32, #tpu.memory_space<vmem>>, vector<32x1xf32>
    %c0_4 = arith.constant 0 : index
    %c2 = arith.constant 2 : index
    %3 = vector.load %arg1[%c0_4, %c2] : memref<32x4xf32, #tpu.memory_space<vmem>>, vector<32x1xf32>
    %c0_5 = arith.constant 0 : index
    %c3 = arith.constant 3 : index
    %4 = vector.load %arg1[%c0_5, %c3] : memref<32x4xf32, #tpu.memory_space<vmem>>, vector<1x1xf32>
    %5 = vector.broadcast %1 : vector<32x1xf32> to vector<32x100xf32>
    %6 = vector.broadcast %0 : vector<1x100xf32> to vector<32x100xf32>
    %7 = arith.mulf %5, %6 : vector<32x100xf32>
    %8 = vector.broadcast %2 : vector<32x1xf32> to vector<32x100xf32>
    %9 = arith.addf %7, %8 : vector<32x100xf32>
    %cst = arith.constant 0.000000e+00 : f32
    %10 = vector.broadcast %cst : f32 to vector<32x100xf32>
    %11 = arith.maximumf %9, %10 : vector<32x100xf32>
    %12 = vector.broadcast %3 : vector<32x1xf32> to vector<32x100xf32>
    %13 = arith.mulf %12, %11 : vector<32x100xf32>
    %14 = vector.extract_strided_slice %13 {offsets = [0, 0], sizes = [16, 100], strides = [1, 1]} : vector<32x100xf32> to vector<16x100xf32>
    %15 = vector.extract_strided_slice %13 {offsets = [16, 0], sizes = [16, 100], strides = [1, 1]} : vector<32x100xf32> to vector<16x100xf32>
    %16 = arith.addf %14, %15 : vector<16x100xf32>
    %17 = vector.extract_strided_slice %16 {offsets = [0, 0], sizes = [8, 100], strides = [1, 1]} : vector<16x100xf32> to vector<8x100xf32>
    %18 = vector.extract_strided_slice %16 {offsets = [8, 0], sizes = [8, 100], strides = [1, 1]} : vector<16x100xf32> to vector<8x100xf32>
    %19 = arith.addf %17, %18 : vector<8x100xf32>
    %cst_6 = arith.constant dense<0.000000e+00> : vector<100xf32>
    %20 = vector.multi_reduction <add>, %19, %cst_6 [0] : vector<8x100xf32> to vector<100xf32>
    %21 = vector.shape_cast %20 : vector<100xf32> to vector<1x100xf32>
    %22 = vector.broadcast %4 : vector<1x1xf32> to vector<1x100xf32>
    %23 = arith.addf %21, %22 : vector<1x100xf32>
    %c0_7 = arith.constant 0 : index
    %c0_8 = arith.constant 0 : index
    %24 = vector.load %arg2[%c0_7, %c0_8] : memref<1x100xf32, #tpu.memory_space<vmem>>, vector<1x100xf32>
    tpu.vector_store %arg2[%c0_7, %c0_8], %23 {strides = array<i32>} : memref<1x100xf32, #tpu.memory_space<vmem>>, vector<1x100xf32>,
    return
  }
}

</mosaic_0001>

<llo_original>
// kernel: net_forward.1
$region0: #{net_forward.1}
  #allocation0 [shape = 'u32[]', space=smem, size = 0x4, offset = 0x4, fixed_abs, tag = 'smem constant byte address 0x4 - core index']
  #allocation1 [shape = 'u32[144,128]{1,0:T(1,128)}', space=vmem, size = 0x12000, scoped, tag = 'internal scratch']
  %s0 = inlined_call_operand.vmem [shape: f32[1,100], index: 0, kind: input, shape index: {}]
  %s1 = inlined_call_operand.vmem [shape: f32[32,4], index: 1, kind: input, shape index: {}]
  %s2 = inlined_call_operand.hbm [shape: f32[1,100], index: 2, kind: output, shape index: {}]
  %s3 = sld [smem:[#allocation0]]
  $region18: #{net_forward.1} parent=0
    _
  %s5 = ssub.s32 1, %s3
  %s6 = scalar_select 0, %s5, %s3
  $region1: #{net_forward.1} parent=0
    #allocation2 [shape = 'u8[512]{0}', space=vmem, size = 0x400, scoped, tag = 'output window, operand 0, single buffered']
    #allocation3 [shape = 's32[1]{0}', space=sflag, size = 0x4, scoped, tag = 'scoped memory for net_forward.1']
    %7 = vsyncpa [#allocation3], 0
    // Predicated region
    $region2: #{net_forward.1} parent=1 // pred_check
      _
    $region3: #{net_forward.1} parent=1 // pred_check_branch
      %9 = sbr.rel (0) target = $region5
    $region4: #{net_forward.1} parent=1 // pred_region
      _
    $region5: #{net_forward.1} parent=1 // pred_fallthru
      _
    // Predicated region
    $region6: #{net_forward.1} parent=1 // pred_check
      _
    $region7: #{net_forward.1} parent=1 // pred_check_branch
      %11 = sbr.rel (0) target = $region9
    $region8: #{net_forward.1} parent=1 // pred_region
      _
    $region9: #{net_forward.1} parent=1 // pred_fallthru
      _
    %v12 = vld [vmem:[%s0] sm:$0x1]
    %v13 = vld [vmem:[%s1] sm:$0xff]
    %v14 = vld [vmem:[%s1 + $0x8] sm:$0xff]
    %v15 = vld [vmem:[%s1 + $0x10] sm:$0xff]
    %v16 = vld [vmem:[%s1 + $0x18] sm:$0xff]
    %v17 = vld [vmem:[%s1] sm:$0x1]
    %19 = vset.pattern.permute.xlu0 0
    %20 = vperm.xlu0 %19, %v13
    %v21 = vpop.permute.xlu0 %20
    %24 = vset.pattern.permute.xlu0 0
    %25 = vperm.xlu0 %24, %v14
    %v26 = vpop.permute.xlu0 %25
    %29 = vset.pattern.permute.xlu0 0
    %30 = vperm.xlu0 %29, %v15
    %v31 = vpop.permute.xlu0 %30
    %34 = vset.pattern.permute.xlu0 0
    %35 = vperm.xlu0 %34, %v16
    %v36 = vpop.permute.xlu0 %35
    %v39 = vlaneseq
    %v40 = vshrl.u32 %v39, 7
    %v41 = vsub.s32 0, %v40
    %v42 = vrot.slane %v12, %v41
    %v44 = vmul.f32 %v21, %v42
    %v45 = vmul.f32 %v26, %v42
    %v46 = vmul.f32 %v31, %v42
    %v47 = vmul.f32 %v36, %v42
    %48 = vset.pattern.permute.xlu0 1
    %49 = vperm.xlu0 %48, %v13
    %v50 = vpop.permute.xlu0 %49
    %52 = vset.pattern.permute.xlu0 1
    %53 = vperm.xlu0 %52, %v14
    %v54 = vpop.permute.xlu0 %53
    %56 = vset.pattern.permute.xlu0 1
    %57 = vperm.xlu0 %56, %v15
    %v58 = vpop.permute.xlu0 %57
    %60 = vset.pattern.permute.xlu0 1
    %61 = vperm.xlu0 %60, %v16
    %v62 = vpop.permute.xlu0 %61
    %v64 = vadd.f32 %v44, %v50
    %v65 = vadd.f32 %v45, %v54
    %v66 = vadd.f32 %v46, %v58
    %v67 = vadd.f32 %v47, %v62
    %v68 = vmax.f32 %v64, 0.0
    %v69 = vmax.f32 %v65, 0.0
    %v70 = vmax.f32 %v66, 0.0
    %v71 = vmax.f32 %v67, 0.0
    %72 = vset.pattern.permute.xlu0 2
    %73 = vperm.xlu0 %72, %v13
    %v74 = vpop.permute.xlu0 %73
    %76 = vset.pattern.permute.xlu0 2
    %77 = vperm.xlu0 %76, %v14
    %v78 = vpop.permute.xlu0 %77
    %80 = vset.pattern.permute.xlu0 2
    %81 = vperm.xlu0 %80, %v15
    %v82 = vpop.permute.xlu0 %81
    %84 = vset.pattern.permute.xlu0 2
    %85 = vperm.xlu0 %84, %v16
    %v86 = vpop.permute.xlu0 %85
    %v88 = vmul.f32 %v74, %v68
    %v89 = vmul.f32 %v78, %v69
    %v90 = vmul.f32 %v82, %v70
    %v91 = vmul.f32 %v86, %v71
    %v92 = vadd.f32 %v88, %v90
    %v93 = vadd.f32 %v89, %v91
    %v94 = vadd.f32 %v92, %v93
    %vm95 = vcmask 818176
    %v96 = vsel %vm95, %v94, 0.0
    %v97 = vrot.slane %v96, 4
    %v98 = vadd.f32 %v96, %v97
    %v99 = vrot.slane %v98, 2
    %v100 = vadd.f32 %v98, %v99
    %v101 = vrot.slane %v100, 1
    %v102 = vadd.f32 %v100, %v101
    %104 = vset.pattern.permute.xlu0 3
    %105 = vperm.xlu0 %104, %v17
    %v106 = vpop.permute.xlu0 %105
    %v108 = vadd.f32 %v102, %v106
    %vm109 = vcmask 811008
    %110 = vst.msk [vmem:[#allocation2] sm:$0x1] %vm109, %v108
    // Predicated region
    $region10: #{net_forward.1} parent=1 // pred_check
      _
    $region11: #{net_forward.1} parent=1 // pred_check_branch
      %112 = sbr.rel (0) target = $region13
    $region12: #{net_forward.1} parent=1 // pred_region
      %s114 = ssub.s32 16, 16
      %115 = vsyncadd [#allocation3], %s114
      %s117 = sshll.u32 [#allocation2], 4
      %s118 = int_to_ptr.vmem [resolvable:$true] %s117
      %120 = dma.vmem_to_hbm [thread:$0]  %s118, 16, %s2, [#allocation3]
    $region13: #{net_forward.1} parent=1 // pred_fallthru
      _
    // Predicated region
    $region14: #{net_forward.1} parent=1 // pred_check
      _
    $region15: #{net_forward.1} parent=1 // pred_check_branch
      %122 = sbr.rel (0) target = $region17
    $region16: #{net_forward.1} parent=1 // pred_region
      %123 = dma.done [#allocation3], 16
    $region17: #{net_forward.1} parent=1 // pred_fallthru
      _
    %124 = vsyncpa [#allocation3], 1

</llo_original>
